<compile_context>
chip_gen: v7x
topology: tpu7x:2x2x1
jax: 0.10.0
libtpu: 0.0.40
codegen_flags: <defaults>
</compile_context>

<pallas_src>
import functools

import jax
import jax.numpy as jnp
from jax.experimental import pallas as pl
from jax.experimental.pallas import tpu as pltpu

# fix_sigma: the PyTorch module iterates over self.fix_sigma, so it must be a
# list of bandwidths.  Deterministic, fixed in-script (kernel_num=5 analog).
SIGMAS = (1.0, 2.0, 4.0, 8.0, 16.0)
_LANE = 128


def _round_up(x, m):
    return ((x + m - 1) // m) * m


def _mmd_tile_kernel(row_ref, col_ref, sqr_ref, sqc_ref, out_ref, *,
                     batch, n_total, tile, sigmas):
    i = pl.program_id(0)   # row-tile index ("parallel")
    j = pl.program_id(1)   # col-tile index ("arbitrary", reduction)

    a = row_ref[...]       # (T, D_pad) f32
    c = col_ref[...]       # (T, D_pad) f32

    # Gram tile on the MXU; contraction on the last dim of both operands.
    gram = jax.lax.dot_general(
        a, c,
        dimension_numbers=(((1,), (1,)), ((), ())),
        preferred_element_type=jnp.float32)               # (T, T)

    # ||r||^2 + ||c||^2 - 2 <r, c>, clamped at 0.
    l2 = jnp.maximum(sqr_ref[...] + sqc_ref[...] - 2.0 * gram, 0.0)

    # Multi-kernel sum.  If the sigmas form an exact /2 geometric ladder we
    # need a single exp (EUP) + repeated squaring (VPU); else generic loop.
    sig = sorted([float(s) for s in sigmas], reverse=True)
    is_ladder = len(sig) > 1 and all(
        abs(sig[t] - 2.0 * sig[t + 1]) <= 1e-9 * sig[t]
        for t in range(len(sig) - 1))
    term = jnp.exp(l2 * (-1.0 / sig[0]))
    ksum = term
    if is_ladder:
        for _ in range(len(sig) - 1):
            term = term * term           # exp(-l2/s) -> exp(-l2/(s/2))
            ksum = ksum + term
    else:
        for s in sig[1:]:
            ksum = ksum + jnp.exp(l2 * (-1.0 / s))

    # Fused signed reduction: +1 for same-half pairs (XX, YY), -1 for
    # cross-half (XY, YX), 0 for padding rows/cols.
    row_ids = i * tile + jax.lax.broadcasted_iota(jnp.int32, (tile, tile), 0)
    col_ids = j * tile + jax.lax.broadcasted_iota(jnp.int32, (tile, tile), 1)
    same_half = (row_ids >= batch) == (col_ids >= batch)
    valid = (row_ids < n_total) & (col_ids < n_total)
    sign = jnp.where(valid, jnp.where(same_half, 1.0, -1.0), 0.0)

    # Per-tile partial: sublane reduce, then fold lanes into a dense 128-wide
    # accumulator (lane-dense, unmasked stores; no full cross-lane reduce).
    col_part = jnp.sum(sign * ksum, axis=0, keepdims=True)   # (1, T)
    folded = col_part[:, :_LANE]
    for cblk in range(1, tile // _LANE):
        folded = folded + col_part[:, cblk * _LANE:(cblk + 1) * _LANE]

    @pl.when(j == 0)
    def _():
        out_ref[...] = jnp.zeros_like(out_ref)

    out_ref[...] += folded.reshape(1, 1, _LANE)


def mmd_loss(source, target, sigmas=SIGMAS, max_tile=256):
    """Pallas implementation of MMD_loss.forward(source, target)."""
    assert source.shape == target.shape and source.ndim == 2
    b, d = source.shape
    n = 2 * b

    # Tile size: lane-aligned (128) and MXU-friendly (256 when big enough).
    tile = min(max_tile, _round_up(n, _LANE))
    n_pad = _round_up(n, tile)
    d_pad = _round_up(d, _LANE)
    num_t = n_pad // tile

    total = jnp.concatenate([source, target], axis=0).astype(jnp.float32)
    total = jnp.pad(total, ((0, n_pad - n), (0, d_pad - d)))

    # Row squared norms, precomputed once and passed in both layouts so the
    # kernel never transposes or re-reduces them.
    sq = jnp.sum(total * total, axis=1)                       # (n_pad,)
    sq_col = sq[:, None]                                      # (n_pad, 1)
    sq_row = sq[None, :]                                      # (1, n_pad)

    kernel = functools.partial(
        _mmd_tile_kernel,
        batch=b, n_total=n, tile=tile,
        sigmas=tuple(float(s) for s in sigmas))

    partials = pl.pallas_call(
        kernel,
        out_shape=jax.ShapeDtypeStruct((num_t, 1, _LANE), jnp.float32),
        grid=(num_t, num_t),
        in_specs=[
            pl.BlockSpec((tile, d_pad), lambda i, j: (i, 0)),   # row tile
            pl.BlockSpec((tile, d_pad), lambda i, j: (j, 0)),   # col tile
            pl.BlockSpec((tile, 1), lambda i, j: (i, 0)),       # row norms
            pl.BlockSpec((1, tile), lambda i, j: (0, j)),       # col norms
        ],
        out_specs=pl.BlockSpec((1, 1, _LANE), lambda i, j: (i, 0, 0)),
        compiler_params=pltpu.CompilerParams(
            dimension_semantics=("parallel", "arbitrary")),
    )(total, total, sq_col, sq_row)

    return jnp.sum(partials) / (b * b)


def _mmd_loss_ref(source, target, sigmas=SIGMAS):
    """Pure-JAX reference mirroring the PyTorch forward (for sanity check)."""
    total = jnp.concatenate([source, target], axis=0)
    diff = total[None, :, :] - total[:, None, :]
    l2 = jnp.sum(diff * diff, axis=2)
    k = sum(jnp.exp(-l2 / s) for s in sigmas)
    b = source.shape[0]
    return jnp.mean(k[:b, :b] + k[b:, b:] - k[:b, b:] - k[b:, :b])


if __name__ == "__main__":
    key = jax.random.PRNGKey(0)
    k_src, k_tgt = jax.random.split(key)
    batch, hidden = 2, 32
    source = jax.random.normal(k_src, (batch, hidden), dtype=jnp.float32)
    target = 0.5 * jax.random.normal(k_tgt, (batch, hidden), dtype=jnp.float32) + 0.1

    loss = mmd_loss(source, target)
    jax.block_until_ready(loss)

    ref = _mmd_loss_ref(source, target)
    assert jnp.allclose(loss, ref, atol=1e-5, rtol=1e-4), (loss, ref)

    print("KERNEL_OK")
</pallas_src>

<mosaic_0001>
module attributes {stable_mosaic.version = 11 : i64} {
  func.func @_mmd_tile_kernel(%arg0: i32, %arg1: i32, %arg2: memref<128x128xf32, #tpu.memory_space<vmem>>, %arg3: memref<128x128xf32, #tpu.memory_space<vmem>>, %arg4: memref<128x1xf32, #tpu.memory_space<vmem>>, %arg5: memref<1x128xf32, #tpu.memory_space<vmem>>, %arg6: memref<1x1x128xf32, #tpu.memory_space<vmem>>) attributes {dimension_semantics = [#tpu.dimension_semantics<parallel>, #tpu.dimension_semantics<arbitrary>], iteration_bounds = array<i64: 1, 1>, scalar_prefetch = 0 : i64, scratch_operands = 0 : i64, tpu.core_type = #tpu.core_type<tc>, window_params = [{transform_indices = @transform_0, window_bounds = array<i64: 128, 128>}, {transform_indices = @transform_1, window_bounds = array<i64: 128, 128>}, {transform_indices = @transform_2, window_bounds = array<i64: 128, 1>}, {transform_indices = @transform_3, window_bounds = array<i64: 1, 128>}, {transform_indices = @transform_4, window_bounds = array<i64: 1, 1, 128>}]} {
    %c0 = arith.constant 0 : index
    %c0_0 = arith.constant 0 : index
    %0 = vector.load %arg2[%c0, %c0_0] : memref<128x128xf32, #tpu.memory_space<vmem>>, vector<128x128xf32>
    %c0_1 = arith.constant 0 : index
    %c0_2 = arith.constant 0 : index
    %1 = vector.load %arg3[%c0_1, %c0_2] : memref<128x128xf32, #tpu.memory_space<vmem>>, vector<128x128xf32>
    %cst = arith.constant dense<0.000000e+00> : vector<128x128xf32>
    %2 = tpu.matmul %0, %1, %cst {dimension_numbers = #tpu.dot_dimension_numbers<[1], [1], [0], [0], [0, 0, 1, 0], [], []>} : vector<128x128xf32>, vector<128x128xf32>, vector<128x128xf32> -> vector<128x128xf32>
    %c0_3 = arith.constant 0 : index
    %c0_4 = arith.constant 0 : index
    %3 = vector.load %arg4[%c0_3, %c0_4] : memref<128x1xf32, #tpu.memory_space<vmem>>, vector<128x1xf32>
    %c0_5 = arith.constant 0 : index
    %c0_6 = arith.constant 0 : index
    %4 = vector.load %arg5[%c0_5, %c0_6] : memref<1x128xf32, #tpu.memory_space<vmem>>, vector<1x128xf32>
    %5 = vector.broadcast %3 : vector<128x1xf32> to vector<128x128xf32>
    %6 = vector.broadcast %4 : vector<1x128xf32> to vector<128x128xf32>
    %7 = arith.addf %5, %6 : vector<128x128xf32>
    %cst_7 = arith.constant 2.000000e+00 : f32
    %8 = vector.broadcast %cst_7 : f32 to vector<128x128xf32>
    %9 = arith.mulf %8, %2 : vector<128x128xf32>
    %10 = arith.subf %7, %9 : vector<128x128xf32>
    %cst_8 = arith.constant 0.000000e+00 : f32
    %11 = vector.broadcast %cst_8 : f32 to vector<128x128xf32>
    %12 = arith.maximumf %10, %11 : vector<128x128xf32>
    %cst_9 = arith.constant -6.250000e-02 : f32
    %13 = vector.broadcast %cst_9 : f32 to vector<128x128xf32>
    %14 = arith.mulf %12, %13 : vector<128x128xf32>
    %15 = math.exp %14 : vector<128x128xf32>
    %16 = arith.mulf %15, %15 : vector<128x128xf32>
    %17 = arith.addf %15, %16 : vector<128x128xf32>
    %18 = arith.mulf %16, %16 : vector<128x128xf32>
    %19 = arith.addf %17, %18 : vector<128x128xf32>
    %20 = arith.mulf %18, %18 : vector<128x128xf32>
    %21 = arith.addf %19, %20 : vector<128x128xf32>
    %22 = arith.mulf %20, %20 : vector<128x128xf32>
    %23 = arith.addf %21, %22 : vector<128x128xf32>
    %c128_i32 = arith.constant 128 : i32
    %24 = arith.muli %arg0, %c128_i32 : i32
    %25 = tpu.iota {dimensions = array<i32: 0>} : vector<128x128xi32>
    %26 = vector.broadcast %24 : i32 to vector<128x128xi32>
    %27 = arith.addi %26, %25 : vector<128x128xi32>
    %c128_i32_10 = arith.constant 128 : i32
    %28 = arith.muli %arg1, %c128_i32_10 : i32
    %29 = tpu.iota {dimensions = array<i32: 1>} : vector<128x128xi32>
    %30 = vector.broadcast %28 : i32 to vector<128x128xi32>
    %31 = arith.addi %30, %29 : vector<128x128xi32>
    %c2_i32 = arith.constant 2 : i32
    %32 = vector.broadcast %c2_i32 : i32 to vector<128x128xi32>
    %33 = arith.cmpi sge, %27, %32 : vector<128x128xi32>
    %c2_i32_11 = arith.constant 2 : i32
    %34 = vector.broadcast %c2_i32_11 : i32 to vector<128x128xi32>
    %35 = arith.cmpi sge, %31, %34 : vector<128x128xi32>
    %36 = arith.xori %33, %35 : vector<128x128xi1>
    %cst_12 = arith.constant dense<true> : vector<128x128xi1>
    %37 = arith.xori %36, %cst_12 : vector<128x128xi1>
    %c4_i32 = arith.constant 4 : i32
    %38 = vector.broadcast %c4_i32 : i32 to vector<128x128xi32>
    %39 = arith.cmpi slt, %27, %38 : vector<128x128xi32>
    %c4_i32_13 = arith.constant 4 : i32
    %40 = vector.broadcast %c4_i32_13 : i32 to vector<128x128xi32>
    %41 = arith.cmpi slt, %31, %40 : vector<128x128xi32>
    %42 = arith.andi %39, %41 : vector<128x128xi1>
    %cst_14 = arith.constant 1.000000e+00 : f32
    %cst_15 = arith.constant -1.000000e+00 : f32
    %43 = vector.broadcast %cst_14 : f32 to vector<128x128xf32>
    %44 = vector.broadcast %cst_15 : f32 to vector<128x128xf32>
    %45 = arith.select %37, %43, %44 : vector<128x128xi1>, vector<128x128xf32>
    %cst_16 = arith.constant 0.000000e+00 : f32
    %46 = vector.broadcast %cst_16 : f32 to vector<128x128xf32>
    %47 = arith.select %42, %45, %46 : vector<128x128xi1>, vector<128x128xf32>
    %48 = arith.mulf %47, %23 : vector<128x128xf32>
    %cst_17 = arith.constant dense<0.000000e+00> : vector<128xf32>
    %49 = vector.multi_reduction <add>, %48, %cst_17 [0] : vector<128x128xf32> to vector<128xf32>
    %50 = vector.shape_cast %49 : vector<128xf32> to vector<1x128xf32>
    %c0_i32 = arith.constant 0 : i32
    %51 = arith.cmpi eq, %arg1, %c0_i32 : i32
    %52 = arith.extui %51 : i1 to i32
    %c0_i32_18 = arith.constant 0 : i32
    %53 = arith.cmpi ne, %52, %c0_i32_18 : i32
    scf.if %53 {
      %cst_25 = arith.constant 0.000000e+00 : f32
      %58 = vector.broadcast %cst_25 : f32 to vector<1x1x128xf32>
      %c0_26 = arith.constant 0 : index
      %c0_27 = arith.constant 0 : index
      %c0_28 = arith.constant 0 : index
      %59 = vector.load %arg6[%c0_26, %c0_27, %c0_28] : memref<1x1x128xf32, #tpu.memory_space<vmem>>, vector<1x1x128xf32>
      tpu.vector_store %arg6[%c0_26, %c0_27, %c0_28], %58 {strides = array<i32>} : memref<1x1x128xf32, #tpu.memory_space<vmem>>, vector<1x1x128xf32>,
    } else {
    }
    %c0_19 = arith.constant 0 : index
    %c0_20 = arith.constant 0 : index
    %c0_21 = arith.constant 0 : index
    %54 = vector.load %arg6[%c0_19, %c0_20, %c0_21] : memref<1x1x128xf32, #tpu.memory_space<vmem>>, vector<1x1x128xf32>
    %55 = vector.shape_cast %50 : vector<1x128xf32> to vector<1x1x128xf32>
    %56 = arith.addf %54, %55 : vector<1x1x128xf32>
    %c0_22 = arith.constant 0 : index
    %c0_23 = arith.constant 0 : index
    %c0_24 = arith.constant 0 : index
    %57 = vector.load %arg6[%c0_22, %c0_23, %c0_24] : memref<1x1x128xf32, #tpu.memory_space<vmem>>, vector<1x1x128xf32>
    tpu.vector_store %arg6[%c0_22, %c0_23, %c0_24], %56 {strides = array<i32>} : memref<1x1x128xf32, #tpu.memory_space<vmem>>, vector<1x1x128xf32>,
    return
  }
  func.func @transform_0(%arg0: i32, %arg1: i32) -> (i32, i32) {
    %c0_i32 = arith.constant 0 : i32
    %c0_i32_0 = arith.constant 0 : i32
    return %arg0, %c0_i32 : i32, i32
  }
  func.func @transform_1(%arg0: i32, %arg1: i32) -> (i32, i32) {
    %c0_i32 = arith.constant 0 : i32
    %c0_i32_0 = arith.constant 0 : i32
    return %arg1, %c0_i32 : i32, i32
  }
  func.func @transform_2(%arg0: i32, %arg1: i32) -> (i32, i32) {
    %c0_i32 = arith.constant 0 : i32
    %c0_i32_0 = arith.constant 0 : i32
    return %arg0, %c0_i32 : i32, i32
  }
  func.func @transform_3(%arg0: i32, %arg1: i32) -> (i32, i32) {
    %c0_i32 = arith.constant 0 : i32
    %c0_i32_0 = arith.constant 0 : i32
    return %c0_i32, %arg1 : i32, i32
  }
  func.func @transform_4(%arg0: i32, %arg1: i32) -> (i32, i32, i32) {
    %c0_i32 = arith.constant 0 : i32
    %c0_i32_0 = arith.constant 0 : i32
    %c0_i32_1 = arith.constant 0 : i32
    return %arg0, %c0_i32, %c0_i32_0 : i32, i32, i32
  }
}

</mosaic_0001>

<llo_original>
// kernel: tpu_custom_call.1
$region0: #{tpu_custom_call.1}
  #allocation0 [shape = 'u32[]', space=smem, size = 0x4, offset = 0x4, fixed_abs, tag = 'smem constant byte address 0x4 - core index']
  #allocation1 [shape = 'u32[144,128]{1,0:T(1,128)}', space=vmem, size = 0x12000, scoped, tag = 'internal scratch']
  %s0 = inlined_call_operand.vmem [shape: f32[128,128], index: 0, kind: input, shape index: {}]
  %s1 = inlined_call_operand.hbm [shape: f32[128,128], index: 1, kind: input, shape index: {}]
  %s2 = inlined_call_operand.vmem [shape: f32[128,1], index: 2, kind: input, shape index: {}]
  %s3 = inlined_call_operand.vmem [shape: f32[1,128], index: 3, kind: input, shape index: {}]
  %s4 = inlined_call_operand.hbm [shape: f32[1,1,128], index: 4, kind: output, shape index: {}]
  %s5 = sld [smem:[#allocation0]]
  $region34: #{tpu_custom_call.1} parent=0
    _
  %s7 = ssub.s32 1, %s5
  %s8 = scalar_select 0, %s7, %s5
  $region1: #{tpu_custom_call.1} parent=0
    #allocation2 [shape = 'u8[65536]{0}', space=vmem, size = 0x10000, scoped, tag = 'input window, operand 1, single buffered']
    #allocation3 [shape = 's32[1]{0}', space=sflag, size = 0x4, scoped, tag = 'scoped memory for tpu_custom_call.1']
    #allocation4 [shape = 's32[1]{0}', space=sflag, size = 0x4, scoped, tag = 'scoped memory for tpu_custom_call.1']
    #allocation5 [shape = 'u8[512]{0}', space=vmem, size = 0x400, scoped, tag = 'output window, operand 0, single buffered']
    %9 = vsyncpa [#allocation3], 0
    %10 = vsyncpa [#allocation4], 0
    // Predicated region
    $region2: #{tpu_custom_call.1} parent=1 // pred_check
      _
    $region3: #{tpu_custom_call.1} parent=1 // pred_check_branch
      %12 = sbr.rel (0) target = $region5
    $region4: #{tpu_custom_call.1} parent=1 // pred_region
      _
    $region5: #{tpu_custom_call.1} parent=1 // pred_fallthru
      _
    // Predicated region
    $region6: #{tpu_custom_call.1} parent=1 // pred_check
      _
    $region7: #{tpu_custom_call.1} parent=1 // pred_check_branch
      %14 = sbr.rel (0) target = $region9
    $region8: #{tpu_custom_call.1} parent=1 // pred_region
      %s16 = ssub.s32 2048, 2048
      %17 = vsyncadd [#allocation3], %s16
      %s18 = sshll.u32 [#allocation2], 4
      %s19 = int_to_ptr.vmem [resolvable:$true] %s18
      %24 = dma.hbm_to_vmem [thread:$0]  %s1, 2048, %s19, [#allocation3], 128, 128, 8
    $region9: #{tpu_custom_call.1} parent=1 // pred_fallthru
      _
    // Predicated region
    $region10: #{tpu_custom_call.1} parent=1 // pred_check
      _
    $region11: #{tpu_custom_call.1} parent=1 // pred_check_branch
      %26 = sbr.rel (0) target = $region13
    $region12: #{tpu_custom_call.1} parent=1 // pred_region
      _
    $region13: #{tpu_custom_call.1} parent=1 // pred_fallthru
      _
    // Predicated region
    $region14: #{tpu_custom_call.1} parent=1 // pred_check
      _
    $region15: #{tpu_custom_call.1} parent=1 // pred_check_branch
      %28 = sbr.rel (0) target = $region17
    $region16: #{tpu_custom_call.1} parent=1 // pred_region
      _
    $region17: #{tpu_custom_call.1} parent=1 // pred_fallthru
      _
    // Predicated region
    $region18: #{tpu_custom_call.1} parent=1 // pred_check
      _
    $region19: #{tpu_custom_call.1} parent=1 // pred_check_branch
      %30 = sbr.rel (0) target = $region21
    $region20: #{tpu_custom_call.1} parent=1 // pred_region
      %31 = dma.done [#allocation3], 2048
    $region21: #{tpu_custom_call.1} parent=1 // pred_fallthru
      _
    %v32 = vld [vmem:[%s0] sm:$0xff]
    %v33 = vld [vmem:[%s0 + $0x8] sm:$0xff]
    %v34 = vld [vmem:[%s0 + $0x10] sm:$0xff]
    %v35 = vld [vmem:[%s0 + $0x18] sm:$0xff]
    %v36 = vld [vmem:[%s0 + $0x20] sm:$0xff]
    %v37 = vld [vmem:[%s0 + $0x28] sm:$0xff]
    %v38 = vld [vmem:[%s0 + $0x30] sm:$0xff]
    %v39 = vld [vmem:[%s0 + $0x38] sm:$0xff]
    %v40 = vld [vmem:[%s0 + $0x40] sm:$0xff]
    %v41 = vld [vmem:[%s0 + $0x48] sm:$0xff]
    %v42 = vld [vmem:[%s0 + $0x50] sm:$0xff]
    %v43 = vld [vmem:[%s0 + $0x58] sm:$0xff]
    %v44 = vld [vmem:[%s0 + $0x60] sm:$0xff]
    %v45 = vld [vmem:[%s0 + $0x68] sm:$0xff]
    %v46 = vld [vmem:[%s0 + $0x70] sm:$0xff]
    %v47 = vld [vmem:[%s0 + $0x78] sm:$0xff]
    %v48 = vld [vmem:[#allocation2] sm:$0xff]
    %v49 = vld [vmem:[#allocation2 + $0x8] sm:$0xff]
    %v50 = vld [vmem:[#allocation2 + $0x10] sm:$0xff]
    %v51 = vld [vmem:[#allocation2 + $0x18] sm:$0xff]
    %v52 = vld [vmem:[#allocation2 + $0x20] sm:$0xff]
    %v53 = vld [vmem:[#allocation2 + $0x28] sm:$0xff]
    %v54 = vld [vmem:[#allocation2 + $0x30] sm:$0xff]
    %v55 = vld [vmem:[#allocation2 + $0x38] sm:$0xff]
    %v56 = vld [vmem:[#allocation2 + $0x40] sm:$0xff]
    %v57 = vld [vmem:[#allocation2 + $0x48] sm:$0xff]
    %v58 = vld [vmem:[#allocation2 + $0x50] sm:$0xff]
    %v59 = vld [vmem:[#allocation2 + $0x58] sm:$0xff]
    %v60 = vld [vmem:[#allocation2 + $0x60] sm:$0xff]
    %v61 = vld [vmem:[#allocation2 + $0x68] sm:$0xff]
    %v62 = vld [vmem:[#allocation2 + $0x70] sm:$0xff]
    %v63 = vld [vmem:[#allocation2 + $0x78] sm:$0xff]
    %64 = vmatprep.subr.mxu0 0.0
    %65 = vmatpush1.xpose.msra.mxu0 %v48
    %66 = vmatprep.subr.mxu0 0.0
    %67 = vmatpush1.xpose.msra.mxu0 %v49
    %68 = vmatprep.subr.mxu0 0.0
    %69 = vmatpush1.xpose.msra.mxu0 %v50
    %70 = vmatprep.subr.mxu0 0.0
    %71 = vmatpush1.xpose.msra.mxu0 %v51
    %72 = vmatprep.subr.mxu0 0.0
    %73 = vmatpush1.xpose.msra.mxu0 %v52
    %74 = vmatprep.subr.mxu0 0.0
    %75 = vmatpush1.xpose.msra.mxu0 %v53
    %76 = vmatprep.subr.mxu0 0.0
    %77 = vmatpush1.xpose.msra.mxu0 %v54
    %78 = vmatprep.subr.mxu0 0.0
    %79 = vmatpush1.xpose.msra.mxu0 %v55
    %80 = vmatprep.subr.mxu0 0.0
    %81 = vmatpush1.xpose.msra.mxu0 %v56
    %82 = vmatprep.subr.mxu0 0.0
    %83 = vmatpush1.xpose.msra.mxu0 %v57
    %84 = vmatprep.subr.mxu0 0.0
    %85 = vmatpush1.xpose.msra.mxu0 %v58
    %86 = vmatprep.subr.mxu0 0.0
    %87 = vmatpush1.xpose.msra.mxu0 %v59
    %88 = vmatprep.subr.mxu0 0.0
    %89 = vmatpush1.xpose.msra.mxu0 %v60
    %90 = vmatprep.subr.mxu0 0.0
    %91 = vmatpush1.xpose.msra.mxu0 %v61
    %92 = vmatprep.subr.mxu0 0.0
    %93 = vmatpush1.xpose.msra.mxu0 %v62
    %94 = vmatprep.subr.mxu0 0.0
    %95 = vmatpush1.xpose.msra.mxu0 %v63
    %96 = vmatprep.subr.mxu0 0.0
    %97 = vmatpush1.xpose.msra.mxu0 0.0
    %98 = vmatprep.subr.mxu0 0.0
    %99 = vmatpush1.xpose.msra.mxu0 0.0
    %100 = vmatprep.subr.mxu0 0.0
    %101 = vmatpush1.xpose.msra.mxu0 0.0
    %102 = vmatprep.subr.mxu0 0.0
    %103 = vmatpush1.xpose.msra.mxu0 0.0
    %104 = vmatprep.subr.mxu0 0.0
    %105 = vmatpush1.xpose.msra.mxu0 0.0
    %106 = vmatprep.subr.mxu0 0.0
    %107 = vmatpush1.xpose.msra.mxu0 0.0
    %108 = vmatprep.subr.mxu0 0.0
    %109 = vmatpush1.xpose.msra.mxu0 0.0
    %110 = vmatprep.subr.mxu0 0.0
    %111 = vmatpush1.xpose.msra.mxu0 0.0
    %112 = vmatprep.subr.mxu0 0.0
    %113 = vmatpush1.xpose.msra.mxu0 0.0
    %114 = vmatprep.subr.mxu0 0.0
    %115 = vmatpush1.xpose.msra.mxu0 0.0
    %116 = vmatprep.subr.mxu0 0.0
    %117 = vmatpush1.xpose.msra.mxu0 0.0
    %118 = vmatprep.subr.mxu0 0.0
    %119 = vmatpush1.xpose.msra.mxu0 0.0
    %120 = vmatprep.subr.mxu0 0.0
    %121 = vmatpush1.xpose.msra.mxu0 0.0
    %122 = vmatprep.subr.mxu0 0.0
    %123 = vmatpush1.xpose.msra.mxu0 0.0
    %124 = vmatprep.subr.mxu0 0.0
    %125 = vmatpush1.xpose.msra.mxu0 0.0
    %126 = vmatprep.subr.mxu0 0.0
    %127 = vmatpush1.xpose.msra.mxu0 0.0
    %128 = vmatprep.mubr.f32.mxu0 0.0
    %129 = vmatmul.mubr.f32.gmra.mrb[0].mxu0 %v32
    %v130 = vpop.f32.mrb[0].mxu0
    %v131 = vadd.f32 0.0, %v130
    %v132 = vpop.f32.mrb[0].mxu0
    %133 = vmatprep.mubr.f32.mxu0 0.0
    %134 = vmatmul.mubr.f32.gmra.mrb[0].mxu0 %v33
    %v135 = vpop.f32.mrb[0].mxu0
    %v136 = vadd.f32 0.0, %v135
    %v137 = vpop.f32.mrb[0].mxu0
    %138 = vmatprep.mubr.f32.mxu0 0.0
    %139 = vmatmul.mubr.f32.gmra.mrb[0].mxu0 %v34
    %v140 = vpop.f32.mrb[0].mxu0
    %v141 = vadd.f32 0.0, %v140
    %v142 = vpop.f32.mrb[0].mxu0
    %143 = vmatprep.mubr.f32.mxu0 0.0
    %144 = vmatmul.mubr.f32.gmra.mrb[0].mxu0 %v35
    %v145 = vpop.f32.mrb[0].mxu0
    %v146 = vadd.f32 0.0, %v145
    %v147 = vpop.f32.mrb[0].mxu0
    %148 = vmatprep.mubr.f32.mxu0 0.0
    %149 = vmatmul.mubr.f32.gmra.mrb[0].mxu0 %v36
    %v150 = vpop.f32.mrb[0].mxu0
    %v151 = vadd.f32 0.0, %v150
    %v152 = vpop.f32.mrb[0].mxu0
    %153 = vmatprep.mubr.f32.mxu0 0.0
    %154 = vmatmul.mubr.f32.gmra.mrb[0].mxu0 %v37
    %v155 = vpop.f32.mrb[0].mxu0
    %v156 = vadd.f32 0.0, %v155
    %v157 = vpop.f32.mrb[0].mxu0
    %158 = vmatprep.mubr.f32.mxu0 0.0
    %159 = vmatmul.mubr.f32.gmra.mrb[0].mxu0 %v38
    %v160 = vpop.f32.mrb[0].mxu0
    %v161 = vadd.f32 0.0, %v160
    %v162 = vpop.f32.mrb[0].mxu0
    %163 = vmatprep.mubr.f32.mxu0 0.0
    %164 = vmatmul.mubr.f32.gmra.mrb[0].mxu0 %v39
    %v165 = vpop.f32.mrb[0].mxu0
    %v166 = vadd.f32 0.0, %v165
    %v167 = vpop.f32.mrb[0].mxu0
    %168 = vmatprep.mubr.f32.mxu0 0.0
    %169 = vmatmul.mubr.f32.gmra.mrb[0].mxu0 %v40
    %v170 = vpop.f32.mrb[0].mxu0
    %v171 = vadd.f32 0.0, %v170
    %v172 = vpop.f32.mrb[0].mxu0
    %173 = vmatprep.mubr.f32.mxu0 0.0
    %174 = vmatmul.mubr.f32.gmra.mrb[0].mxu0 %v41
    %v175 = vpop.f32.mrb[0].mxu0
    %v176 = vadd.f32 0.0, %v175
    %v177 = vpop.f32.mrb[0].mxu0
    %178 = vmatprep.mubr.f32.mxu0 0.0
    %179 = vmatmul.mubr.f32.gmra.mrb[0].mxu0 %v42
    %v180 = vpop.f32.mrb[0].mxu0
    %v181 = vadd.f32 0.0, %v180
    %v182 = vpop.f32.mrb[0].mxu0
    %183 = vmatprep.mubr.f32.mxu0 0.0
    %184 = vmatmul.mubr.f32.gmra.mrb[0].mxu0 %v43
    %v185 = vpop.f32.mrb[0].mxu0
    %v186 = vadd.f32 0.0, %v185
    %v187 = vpop.f32.mrb[0].mxu0
    %188 = vmatprep.mubr.f32.mxu0 0.0
    %189 = vmatmul.mubr.f32.gmra.mrb[0].mxu0 %v44
    %v190 = vpop.f32.mrb[0].mxu0
    %v191 = vadd.f32 0.0, %v190
    %v192 = vpop.f32.mrb[0].mxu0
    %193 = vmatprep.mubr.f32.mxu0 0.0
    %194 = vmatmul.mubr.f32.gmra.mrb[0].mxu0 %v45
    %v195 = vpop.f32.mrb[0].mxu0
    %v196 = vadd.f32 0.0, %v195
    %v197 = vpop.f32.mrb[0].mxu0
    %198 = vmatprep.mubr.f32.mxu0 0.0
    %199 = vmatmul.mubr.f32.gmra.mrb[0].mxu0 %v46
    %v200 = vpop.f32.mrb[0].mxu0
    %v201 = vadd.f32 0.0, %v200
    %v202 = vpop.f32.mrb[0].mxu0
    %203 = vmatprep.mubr.f32.mxu0 0.0
    %204 = vmatmul.mubr.f32.gmra.mrb[0].mxu0 %v47
    %v205 = vpop.f32.mrb[0].mxu0
    %v206 = vadd.f32 0.0, %v205
    %v207 = vpop.f32.mrb[0].mxu0
    %208 = vdwg.mxu0
    %v209 = vld [vmem:[%s2] sm:$0xff]
    %v210 = vld [vmem:[%s2 + $0x8] sm:$0xff]
    %v211 = vld [vmem:[%s2 + $0x10] sm:$0xff]
    %v212 = vld [vmem:[%s2 + $0x18] sm:$0xff]
    %v213 = vld [vmem:[%s2 + $0x20] sm:$0xff]
    %v214 = vld [vmem:[%s2 + $0x28] sm:$0xff]
    %v215 = vld [vmem:[%s2 + $0x30] sm:$0xff]
    %v216 = vld [vmem:[%s2 + $0x38] sm:$0xff]
    %v217 = vld [vmem:[%s2 + $0x40] sm:$0xff]
    %v218 = vld [vmem:[%s2 + $0x48] sm:$0xff]
    %v219 = vld [vmem:[%s2 + $0x50] sm:$0xff]
    %v220 = vld [vmem:[%s2 + $0x58] sm:$0xff]
    %v221 = vld [vmem:[%s2 + $0x60] sm:$0xff]
    %v222 = vld [vmem:[%s2 + $0x68] sm:$0xff]
    %v223 = vld [vmem:[%s2 + $0x70] sm:$0xff]
    %v224 = vld [vmem:[%s2 + $0x78] sm:$0xff]
    %v225 = vld [vmem:[%s3] sm:$0x1]
    %227 = vset.pattern.permute.xlu0 0
    %228 = vperm.xlu0 %227, %v209
    %v229 = vpop.permute.xlu0 %228
    %232 = vset.pattern.permute.xlu0 0
    %233 = vperm.xlu0 %232, %v210
    %v234 = vpop.permute.xlu0 %233
    %237 = vset.pattern.permute.xlu0 0
    %238 = vperm.xlu0 %237, %v211
    %v239 = vpop.permute.xlu0 %238
    %242 = vset.pattern.permute.xlu0 0
    %243 = vperm.xlu0 %242, %v212
    %v244 = vpop.permute.xlu0 %243
    %247 = vset.pattern.permute.xlu0 0
    %248 = vperm.xlu0 %247, %v213
    %v249 = vpop.permute.xlu0 %248
    %252 = vset.pattern.permute.xlu0 0
    %253 = vperm.xlu0 %252, %v214
    %v254 = vpop.permute.xlu0 %253
    %257 = vset.pattern.permute.xlu0 0
    %258 = vperm.xlu0 %257, %v215
    %v259 = vpop.permute.xlu0 %258
    %262 = vset.pattern.permute.xlu0 0
    %263 = vperm.xlu0 %262, %v216
    %v264 = vpop.permute.xlu0 %263
    %267 = vset.pattern.permute.xlu0 0
    %268 = vperm.xlu0 %267, %v217
    %v269 = vpop.permute.xlu0 %268
    %272 = vset.pattern.permute.xlu0 0
    %273 = vperm.xlu0 %272, %v218
    %v274 = vpop.permute.xlu0 %273
    %277 = vset.pattern.permute.xlu0 0
    %278 = vperm.xlu0 %277, %v219
    %v279 = vpop.permute.xlu0 %278
    %282 = vset.pattern.permute.xlu0 0
    %283 = vperm.xlu0 %282, %v220
    %v284 = vpop.permute.xlu0 %283
    %287 = vset.pattern.permute.xlu0 0
    %288 = vperm.xlu0 %287, %v221
    %v289 = vpop.permute.xlu0 %288
    %292 = vset.pattern.permute.xlu0 0
    %293 = vperm.xlu0 %292, %v222
    %v294 = vpop.permute.xlu0 %293
    %297 = vset.pattern.permute.xlu0 0
    %298 = vperm.xlu0 %297, %v223
    %v299 = vpop.permute.xlu0 %298
    %302 = vset.pattern.permute.xlu0 0
    %303 = vperm.xlu0 %302, %v224
    %v304 = vpop.permute.xlu0 %303
    %v307 = vlaneseq
    %v308 = vshrl.u32 %v307, 7
    %v309 = vsub.s32 0, %v308
    %v310 = vrot.slane %v225, %v309
    %v312 = vadd.f32 %v229, %v310
    %v313 = vadd.f32 %v234, %v310
    %v314 = vadd.f32 %v239, %v310
    %v315 = vadd.f32 %v244, %v310
    %v316 = vadd.f32 %v249, %v310
    %v317 = vadd.f32 %v254, %v310
    %v318 = vadd.f32 %v259, %v310
    %v319 = vadd.f32 %v264, %v310
    %v320 = vadd.f32 %v269, %v310
    %v321 = vadd.f32 %v274, %v310
    %v322 = vadd.f32 %v279, %v310
    %v323 = vadd.f32 %v284, %v310
    %v324 = vadd.f32 %v289, %v310
    %v325 = vadd.f32 %v294, %v310
    %v326 = vadd.f32 %v299, %v310
    %v327 = vadd.f32 %v304, %v310
    %v328 = vmul.f32 %v131, 2.0
    %v329 = vmul.f32 %v136, 2.0
    %v330 = vmul.f32 %v141, 2.0
    %v331 = vmul.f32 %v146, 2.0
    %v332 = vmul.f32 %v151, 2.0
    %v333 = vmul.f32 %v156, 2.0
    %v334 = vmul.f32 %v161, 2.0
    %v335 = vmul.f32 %v166, 2.0
    %v336 = vmul.f32 %v171, 2.0
    %v337 = vmul.f32 %v176, 2.0
    %v338 = vmul.f32 %v181, 2.0
    %v339 = vmul.f32 %v186, 2.0
    %v340 = vmul.f32 %v191, 2.0
    %v341 = vmul.f32 %v196, 2.0
    %v342 = vmul.f32 %v201, 2.0
    %v343 = vmul.f32 %v206, 2.0
    %v344 = vsub.f32 %v312, %v328
    %v345 = vsub.f32 %v313, %v329
    %v346 = vsub.f32 %v314, %v330
    %v347 = vsub.f32 %v315, %v331
    %v348 = vsub.f32 %v316, %v332
    %v349 = vsub.f32 %v317, %v333
    %v350 = vsub.f32 %v318, %v334
    %v351 = vsub.f32 %v319, %v335
    %v352 = vsub.f32 %v320, %v336
    %v353 = vsub.f32 %v321, %v337
    %v354 = vsub.f32 %v322, %v338
    %v355 = vsub.f32 %v323, %v339
    %v356 = vsub.f32 %v324, %v340
    %v357 = vsub.f32 %v325, %v341
    %v358 = vsub.f32 %v326, %v342
    %v359 = vsub.f32 %v327, %v343
    %v360 = vmax.f32 %v344, 0.0
    %v361 = vmax.f32 %v345, 0.0
    %v362 = vmax.f32 %v346, 0.0
    %v363 = vmax.f32 %v347, 0.0
    %v364 = vmax.f32 %v348, 0.0
    %v365 = vmax.f32 %v349, 0.0
    %v366 = vmax.f32 %v350, 0.0
    %v367 = vmax.f32 %v351, 0.0
    %v368 = vmax.f32 %v352, 0.0
    %v369 = vmax.f32 %v353, 0.0
    %v370 = vmax.f32 %v354, 0.0
    %v371 = vmax.f32 %v355, 0.0
    %v372 = vmax.f32 %v356, 0.0
    %v373 = vmax.f32 %v357, 0.0
    %v374 = vmax.f32 %v358, 0.0
    %v375 = vmax.f32 %v359, 0.0
    %v376 = vmul.f32 %v360, -0.0625
    %v377 = vmul.f32 %v361, -0.0625
    %v378 = vmul.f32 %v362, -0.0625
    %v379 = vmul.f32 %v363, -0.0625
    %v380 = vmul.f32 %v364, -0.0625
    %v381 = vmul.f32 %v365, -0.0625
    %v382 = vmul.f32 %v366, -0.0625
    %v383 = vmul.f32 %v367, -0.0625
    %v384 = vmul.f32 %v368, -0.0625
    %v385 = vmul.f32 %v369, -0.0625
    %v386 = vmul.f32 %v370, -0.0625
    %v387 = vmul.f32 %v371, -0.0625
    %v388 = vmul.f32 %v372, -0.0625
    %v389 = vmul.f32 %v373, -0.0625
    %v390 = vmul.f32 %v374, -0.0625
    %v391 = vmul.f32 %v375, -0.0625
    %v392 = vmul.f32 %v376, 1.442695
    %v393 = vpow.pop %v392
    %v394 = vmul.f32 %v377, 1.442695
    %v395 = vpow.pop %v394
    %v396 = vmul.f32 %v378, 1.442695
    %v397 = vpow.pop %v396
    %v398 = vmul.f32 %v379, 1.442695
    %v399 = vpow.pop %v398
    %v400 = vmul.f32 %v380, 1.442695
    %v401 = vpow.pop %v400
    %v402 = vmul.f32 %v381, 1.442695
    %v403 = vpow.pop %v402
    %v404 = vmul.f32 %v382, 1.442695
    %v405 = vpow.pop %v404
    %v406 = vmul.f32 %v383, 1.442695
    %v407 = vpow.pop %v406
    %v408 = vmul.f32 %v384, 1.442695
    %v409 = vpow.pop %v408
    %v410 = vmul.f32 %v385, 1.442695
    %v411 = vpow.pop %v410
    %v412 = vmul.f32 %v386, 1.442695
    %v413 = vpow.pop %v412
    %v414 = vmul.f32 %v387, 1.442695
    %v415 = vpow.pop %v414
    %v416 = vmul.f32 %v388, 1.442695
    %v417 = vpow.pop %v416
    %v418 = vmul.f32 %v389, 1.442695
    %v419 = vpow.pop %v418
    %v420 = vmul.f32 %v390, 1.442695
    %v421 = vpow.pop %v420
    %v422 = vmul.f32 %v391, 1.442695
    %v423 = vpow.pop %v422
    %v424 = vmul.f32 %v393, %v393
    %v425 = vmul.f32 %v395, %v395
    %v426 = vmul.f32 %v397, %v397
    %v427 = vmul.f32 %v399, %v399
    %v428 = vmul.f32 %v401, %v401
    %v429 = vmul.f32 %v403, %v403
    %v430 = vmul.f32 %v405, %v405
    %v431 = vmul.f32 %v407, %v407
    %v432 = vmul.f32 %v409, %v409
    %v433 = vmul.f32 %v411, %v411
    %v434 = vmul.f32 %v413, %v413
    %v435 = vmul.f32 %v415, %v415
    %v436 = vmul.f32 %v417, %v417
    %v437 = vmul.f32 %v419, %v419
    %v438 = vmul.f32 %v421, %v421
    %v439 = vmul.f32 %v423, %v423
    %v440 = vadd.f32 %v393, %v424
    %v441 = vadd.f32 %v395, %v425
    %v442 = vadd.f32 %v397, %v426
    %v443 = vadd.f32 %v399, %v427
    %v444 = vadd.f32 %v401, %v428
    %v445 = vadd.f32 %v403, %v429
    %v446 = vadd.f32 %v405, %v430
    %v447 = vadd.f32 %v407, %v431
    %v448 = vadd.f32 %v409, %v432
    %v449 = vadd.f32 %v411, %v433
    %v450 = vadd.f32 %v413, %v434
    %v451 = vadd.f32 %v415, %v435
    %v452 = vadd.f32 %v417, %v436
    %v453 = vadd.f32 %v419, %v437
    %v454 = vadd.f32 %v421, %v438
    %v455 = vadd.f32 %v423, %v439
    %v456 = vmul.f32 %v424, %v424
    %v457 = vmul.f32 %v425, %v425
    %v458 = vmul.f32 %v426, %v426
    %v459 = vmul.f32 %v427, %v427
    %v460 = vmul.f32 %v428, %v428
    %v461 = vmul.f32 %v429, %v429
    %v462 = vmul.f32 %v430, %v430
    %v463 = vmul.f32 %v431, %v431
    %v464 = vmul.f32 %v432, %v432
    %v465 = vmul.f32 %v433, %v433
    %v466 = vmul.f32 %v434, %v434
    %v467 = vmul.f32 %v435, %v435
    %v468 = vmul.f32 %v436, %v436
    %v469 = vmul.f32 %v437, %v437
    %v470 = vmul.f32 %v438, %v438
    %v471 = vmul.f32 %v439, %v439
    %v472 = vadd.f32 %v440, %v456
    %v473 = vadd.f32 %v441, %v457
    %v474 = vadd.f32 %v442, %v458
    %v475 = vadd.f32 %v443, %v459
    %v476 = vadd.f32 %v444, %v460
    %v477 = vadd.f32 %v445, %v461
    %v478 = vadd.f32 %v446, %v462
    %v479 = vadd.f32 %v447, %v463
    %v480 = vadd.f32 %v448, %v464
    %v481 = vadd.f32 %v449, %v465
    %v482 = vadd.f32 %v450, %v466
    %v483 = vadd.f32 %v451, %v467
    %v484 = vadd.f32 %v452, %v468
    %v485 = vadd.f32 %v453, %v469
    %v486 = vadd.f32 %v454, %v470
    %v487 = vadd.f32 %v455, %v471
    %v488 = vmul.f32 %v456, %v456
    %v489 = vmul.f32 %v457, %v457
    %v490 = vmul.f32 %v458, %v458
    %v491 = vmul.f32 %v459, %v459
    %v492 = vmul.f32 %v460, %v460
    %v493 = vmul.f32 %v461, %v461
    %v494 = vmul.f32 %v462, %v462
    %v495 = vmul.f32 %v463, %v463
    %v496 = vmul.f32 %v464, %v464
    %v497 = vmul.f32 %v465, %v465
    %v498 = vmul.f32 %v466, %v466
    %v499 = vmul.f32 %v467, %v467
    %v500 = vmul.f32 %v468, %v468
    %v501 = vmul.f32 %v469, %v469
    %v502 = vmul.f32 %v470, %v470
    %v503 = vmul.f32 %v471, %v471
    %v504 = vadd.f32 %v472, %v488
    %v505 = vadd.f32 %v473, %v489
    %v506 = vadd.f32 %v474, %v490
    %v507 = vadd.f32 %v475, %v491
    %v508 = vadd.f32 %v476, %v492
    %v509 = vadd.f32 %v477, %v493
    %v510 = vadd.f32 %v478, %v494
    %v511 = vadd.f32 %v479, %v495
    %v512 = vadd.f32 %v480, %v496
    %v513 = vadd.f32 %v481, %v497
    %v514 = vadd.f32 %v482, %v498
    %v515 = vadd.f32 %v483, %v499
    %v516 = vadd.f32 %v484, %v500
    %v517 = vadd.f32 %v485, %v501
    %v518 = vadd.f32 %v486, %v502
    %v519 = vadd.f32 %v487, %v503
    %v520 = vmul.f32 %v488, %v488
    %v521 = vmul.f32 %v489, %v489
    %v522 = vmul.f32 %v490, %v490
    %v523 = vmul.f32 %v491, %v491
    %v524 = vmul.f32 %v492, %v492
    %v525 = vmul.f32 %v493, %v493
    %v526 = vmul.f32 %v494, %v494
    %v527 = vmul.f32 %v495, %v495
    %v528 = vmul.f32 %v496, %v496
    %v529 = vmul.f32 %v497, %v497
    %v530 = vmul.f32 %v498, %v498
    %v531 = vmul.f32 %v499, %v499
    %v532 = vmul.f32 %v500, %v500
    %v533 = vmul.f32 %v501, %v501
    %v534 = vmul.f32 %v502, %v502
    %v535 = vmul.f32 %v503, %v503
    %v536 = vadd.f32 %v504, %v520
    %v537 = vadd.f32 %v505, %v521
    %v538 = vadd.f32 %v506, %v522
    %v539 = vadd.f32 %v507, %v523
    %v540 = vadd.f32 %v508, %v524
    %v541 = vadd.f32 %v509, %v525
    %v542 = vadd.f32 %v510, %v526
    %v543 = vadd.f32 %v511, %v527
    %v544 = vadd.f32 %v512, %v528
    %v545 = vadd.f32 %v513, %v529
    %v546 = vadd.f32 %v514, %v530
    %v547 = vadd.f32 %v515, %v531
    %v548 = vadd.f32 %v516, %v532
    %v549 = vadd.f32 %v517, %v533
    %v550 = vadd.f32 %v518, %v534
    %v551 = vadd.f32 %v519, %v535
    %s552 = smul.u32 0, 128
    %v553 = vlaneseq
    %v554 = vshrl.u32 %v553, 7
    %v555 = vadd.s32 %v554, 8
    %v556 = vadd.s32 %v554, 16
    %v557 = vadd.s32 %v554, 24
    %v558 = vadd.s32 %v554, 32
    %v559 = vadd.s32 %v554, 40
    %v560 = vadd.s32 %v554, 48
    %v561 = vadd.s32 %v554, 56
    %v562 = vadd.s32 %v554, 64
    %v563 = vadd.s32 %v554, 72
    %v564 = vadd.s32 %v554, 80
    %v565 = vadd.s32 %v554, 88
    %v566 = vadd.s32 %v554, 96
    %v567 = vadd.s32 %v554, 104
    %v568 = vadd.s32 %v554, 112
    %v569 = vadd.s32 %v554, 120
    %v570 = vstv %s552
    %v571 = vadd.s32 %v570, %v554
    %v572 = vadd.s32 %v570, %v555
    %v573 = vadd.s32 %v570, %v556
    %v574 = vadd.s32 %v570, %v557
    %v575 = vadd.s32 %v570, %v558
    %v576 = vadd.s32 %v570, %v559
    %v577 = vadd.s32 %v570, %v560
    %v578 = vadd.s32 %v570, %v561
    %v579 = vadd.s32 %v570, %v562
    %v580 = vadd.s32 %v570, %v563
    %v581 = vadd.s32 %v570, %v564
    %v582 = vadd.s32 %v570, %v565
    %v583 = vadd.s32 %v570, %v566
    %v584 = vadd.s32 %v570, %v567
    %v585 = vadd.s32 %v570, %v568
    %v586 = vadd.s32 %v570, %v569
    %s587 = smul.u32 0, 128
    %v588 = vlaneseq
    %v589 = vand.u32 %v588, 127
    %v590 = vstv %s587
    %v591 = vadd.s32 %v590, %v589
    %vm592 = vcmp.ge.s32.totalorder %v571, 2
    %vm593 = vcmp.ge.s32.totalorder %v572, 2
    %vm594 = vcmp.ge.s32.totalorder %v573, 2
    %vm595 = vcmp.ge.s32.totalorder %v574, 2
    %vm596 = vcmp.ge.s32.totalorder %v575, 2
    %vm597 = vcmp.ge.s32.totalorder %v576, 2
    %vm598 = vcmp.ge.s32.totalorder %v577, 2
    %vm599 = vcmp.ge.s32.totalorder %v578, 2
    %vm600 = vcmp.ge.s32.totalorder %v579, 2
    %vm601 = vcmp.ge.s32.totalorder %v580, 2
    %vm602 = vcmp.ge.s32.totalorder %v581, 2
    %vm603 = vcmp.ge.s32.totalorder %v582, 2
    %vm604 = vcmp.ge.s32.totalorder %v583, 2
    %vm605 = vcmp.ge.s32.totalorder %v584, 2
    %vm606 = vcmp.ge.s32.totalorder %v585, 2
    %vm607 = vcmp.ge.s32.totalorder %v586, 2
    %vm608 = vcmp.ge.s32.totalorder %v591, 2
    %vm609 = vmxor %vm592, %vm608
    %vm610 = vmxor %vm593, %vm608
    %vm611 = vmxor %vm594, %vm608
    %vm612 = vmxor %vm595, %vm608
    %vm613 = vmxor %vm596, %vm608
    %vm614 = vmxor %vm597, %vm608
    %vm615 = vmxor %vm598, %vm608
    %vm616 = vmxor %vm599, %vm608
    %vm617 = vmxor %vm600, %vm608
    %vm618 = vmxor %vm601, %vm608
    %vm619 = vmxor %vm602, %vm608
    %vm620 = vmxor %vm603, %vm608
    %vm621 = vmxor %vm604, %vm608
    %vm622 = vmxor %vm605, %vm608
    %vm623 = vmxor %vm606, %vm608
    %vm624 = vmxor %vm607, %vm608
    %vm625 = vmxor %vm609, 1
    %vm626 = vmxor %vm610, 1
    %vm627 = vmxor %vm611, 1
    %vm628 = vmxor %vm612, 1
    %vm629 = vmxor %vm613, 1
    %vm630 = vmxor %vm614, 1
    %vm631 = vmxor %vm615, 1
    %vm632 = vmxor %vm616, 1
    %vm633 = vmxor %vm617, 1
    %vm634 = vmxor %vm618, 1
    %vm635 = vmxor %vm619, 1
    %vm636 = vmxor %vm620, 1
    %vm637 = vmxor %vm621, 1
    %vm638 = vmxor %vm622, 1
    %vm639 = vmxor %vm623, 1
    %vm640 = vmxor %vm624, 1
    %vm641 = vcmp.lt.s32.totalorder %v571, 4
    %vm642 = vcmp.lt.s32.totalorder %v572, 4
    %vm643 = vcmp.lt.s32.totalorder %v573, 4
    %vm644 = vcmp.lt.s32.totalorder %v574, 4
    %vm645 = vcmp.lt.s32.totalorder %v575, 4
    %vm646 = vcmp.lt.s32.totalorder %v576, 4
    %vm647 = vcmp.lt.s32.totalorder %v577, 4
    %vm648 = vcmp.lt.s32.totalorder %v578, 4
    %vm649 = vcmp.lt.s32.totalorder %v579, 4
    %vm650 = vcmp.lt.s32.totalorder %v580, 4
    %vm651 = vcmp.lt.s32.totalorder %v581, 4
    %vm652 = vcmp.lt.s32.totalorder %v582, 4
    %vm653 = vcmp.lt.s32.totalorder %v583, 4
    %vm654 = vcmp.lt.s32.totalorder %v584, 4
    %vm655 = vcmp.lt.s32.totalorder %v585, 4
    %vm656 = vcmp.lt.s32.totalorder %v586, 4
    %vm657 = vcmp.lt.s32.totalorder %v591, 4
    %vm658 = vmand %vm641, %vm657
    %vm659 = vmand %vm642, %vm657
    %vm660 = vmand %vm643, %vm657
    %vm661 = vmand %vm644, %vm657
    %vm662 = vmand %vm645, %vm657
    %vm663 = vmand %vm646, %vm657
    %vm664 = vmand %vm647, %vm657
    %vm665 = vmand %vm648, %vm657
    %vm666 = vmand %vm649, %vm657
    %vm667 = vmand %vm650, %vm657
    %vm668 = vmand %vm651, %vm657
    %vm669 = vmand %vm652, %vm657
    %vm670 = vmand %vm653, %vm657
    %vm671 = vmand %vm654, %vm657
    %vm672 = vmand %vm655, %vm657
    %vm673 = vmand %vm656, %vm657
    %v674 = vsel %vm625, 1.0, -1.0
    %v675 = vsel %vm626, 1.0, -1.0
    %v676 = vsel %vm627, 1.0, -1.0
    %v677 = vsel %vm628, 1.0, -1.0
    %v678 = vsel %vm629, 1.0, -1.0
    %v679 = vsel %vm630, 1.0, -1.0
    %v680 = vsel %vm631, 1.0, -1.0
    %v681 = vsel %vm632, 1.0, -1.0
    %v682 = vsel %vm633, 1.0, -1.0
    %v683 = vsel %vm634, 1.0, -1.0
    %v684 = vsel %vm635, 1.0, -1.0
    %v685 = vsel %vm636, 1.0, -1.0
    %v686 = vsel %vm637, 1.0, -1.0
    %v687 = vsel %vm638, 1.0, -1.0
    %v688 = vsel %vm639, 1.0, -1.0
    %v689 = vsel %vm640, 1.0, -1.0
    %v690 = vsel %vm658, %v674, 0.0
    %v691 = vsel %vm659, %v675, 0.0
    %v692 = vsel %vm660, %v676, 0.0
    %v693 = vsel %vm661, %v677, 0.0
    %v694 = vsel %vm662, %v678, 0.0
    %v695 = vsel %vm663, %v679, 0.0
    %v696 = vsel %vm664, %v680, 0.0
    %v697 = vsel %vm665, %v681, 0.0
    %v698 = vsel %vm666, %v682, 0.0
    %v699 = vsel %vm667, %v683, 0.0
    %v700 = vsel %vm668, %v684, 0.0
    %v701 = vsel %vm669, %v685, 0.0
    %v702 = vsel %vm670, %v686, 0.0
    %v703 = vsel %vm671, %v687, 0.0
    %v704 = vsel %vm672, %v688, 0.0
    %v705 = vsel %vm673, %v689, 0.0
    %v706 = vmul.f32 %v690, %v536
    %v707 = vmul.f32 %v691, %v537
    %v708 = vmul.f32 %v692, %v538
    %v709 = vmul.f32 %v693, %v539
    %v710 = vmul.f32 %v694, %v540
    %v711 = vmul.f32 %v695, %v541
    %v712 = vmul.f32 %v696, %v542
    %v713 = vmul.f32 %v697, %v543
    %v714 = vmul.f32 %v698, %v544
    %v715 = vmul.f32 %v699, %v545
    %v716 = vmul.f32 %v700, %v546
    %v717 = vmul.f32 %v701, %v547
    %v718 = vmul.f32 %v702, %v548
    %v719 = vmul.f32 %v703, %v549
    %v720 = vmul.f32 %v704, %v550
    %v721 = vmul.f32 %v705, %v551
    %v722 = vadd.f32 %v706, %v707
    %v723 = vadd.f32 %v722, %v708
    %v724 = vadd.f32 %v723, %v709
    %v725 = vadd.f32 %v724, %v710
    %v726 = vadd.f32 %v725, %v711
    %v727 = vadd.f32 %v726, %v712
    %v728 = vadd.f32 %v727, %v713
    %v729 = vadd.f32 %v728, %v714
    %v730 = vadd.f32 %v729, %v715
    %v731 = vadd.f32 %v730, %v716
    %v732 = vadd.f32 %v731, %v717
    %v733 = vadd.f32 %v732, %v718
    %v734 = vadd.f32 %v733, %v719
    %v735 = vadd.f32 %v734, %v720
    %v736 = vadd.f32 %v735, %v721
    %v737 = vrot.slane %v736, 4
    %v738 = vadd.f32 %v736, %v737
    %v739 = vrot.slane %v738, 2
    %v740 = vadd.f32 %v738, %v739
    %v741 = vrot.slane %v740, 1
    %v742 = vadd.f32 %v740, %v741
    %p743 = scmp.eq.s32.totalorder 0, 0
    // Predicated region
    $region22: #{tpu_custom_call.1} parent=1 // pred_check
      %p744 = pneg %p743
    $region23: #{tpu_custom_call.1} parent=1 // pred_check_branch
      %746 = sbr.rel (%p744) target = $region25
    $region24: #{tpu_custom_call.1} parent=1 // pred_region
      %747 = vst [vmem:[#allocation5] sm:$0x1] 0.0
    $region25: #{tpu_custom_call.1} parent=1 // pred_fallthru
      _
    %v748 = vld [vmem:[#allocation5] sm:$0x1]
    %v749 = vadd.f32 %v748, %v742
    %750 = vst [vmem:[#allocation5] sm:$0x1] %v749
    // Predicated region
    $region26: #{tpu_custom_call.1} parent=1 // pred_check
      _
    $region27: #{tpu_custom_call.1} parent=1 // pred_check_branch
      %752 = sbr.rel (0) target = $region29
    $region28: #{tpu_custom_call.1} parent=1 // pred_region
      %s754 = ssub.s32 16, 16
      %755 = vsyncadd [#allocation4], %s754
      %s757 = sshll.u32 [#allocation5], 4
      %s758 = int_to_ptr.vmem [resolvable:$true] %s757
      %760 = dma.vmem_to_hbm [thread:$0]  %s758, 16, %s4, [#allocation4]
    $region29: #{tpu_custom_call.1} parent=1 // pred_fallthru
      _
    // Predicated region
    $region30: #{tpu_custom_call.1} parent=1 // pred_check
      _
    $region31: #{tpu_custom_call.1} parent=1 // pred_check_branch
      %762 = sbr.rel (0) target = $region33
    $region32: #{tpu_custom_call.1} parent=1 // pred_region
      %763 = dma.done [#allocation4], 16
    $region33: #{tpu_custom_call.1} parent=1 // pred_fallthru
      _
    %764 = vsyncpa [#allocation3], 1
    %765 = vsyncpa [#allocation4], 1

</llo_original>
